<compile_context>
chip_gen: v6e
topology: v6e:2x2x1
jax: 0.10.0
libtpu: 0.0.40
codegen_flags: <defaults>
</compile_context>

<pallas_src>
import functools

import jax
import jax.numpy as jnp
from jax.experimental import pallas as pl
from jax.experimental.pallas import tpu as pltpu


def _ffn_kernel(x_ref, w12_ref, w3_ref, o_ref, acc_ref):
    # x_ref: (TM, E)   w12_ref: (2, E, TH) packed fc1/fc2   w3_ref: (TH, E)
    # o_ref: (TM, E)   acc_ref: f32 VMEM (TM, E) accumulator over the H grid axis.
    h = pl.program_id(1)

    @pl.when(h == 0)
    def _():
        acc_ref[...] = jnp.zeros_like(acc_ref)

    x = x_ref[...]
    h1 = jnp.dot(x, w12_ref[0], preferred_element_type=jnp.float32)   # fc1 slab
    h2 = jnp.dot(x, w12_ref[1], preferred_element_type=jnp.float32)   # fc2 slab
    gated = (h1 * jax.nn.sigmoid(h1)) * h2                            # SwiGLU gate, f32
    acc_ref[...] += jnp.dot(gated.astype(w3_ref.dtype), w3_ref[...],
                            preferred_element_type=jnp.float32)       # fc3 partial

    @pl.when(h == pl.num_programs(1) - 1)
    def _():
        o_ref[...] = acc_ref[...].astype(o_ref.dtype)


def _vmem_capacity_bytes():
    try:
        return int(pltpu.get_tpu_info().vmem_capacity_bytes)
    except Exception:
        return 64 * 1024 * 1024  # conservative (v7x-sized) fallback


def _pick_tile(dim, target, align):
    """Largest multiple of `align` that divides `dim` and is <= target.

    Falls back to the full dimension only when no aligned divisor exists
    (a full-extent block dim is always legal under the (8,128) rule)."""
    if dim <= target:
        return dim
    t = (target // align) * align
    while t >= align:
        if dim % t == 0:
            return t
        t -= align
    return dim


def _plan_tiles(M, E, H, itemsize, vmem_cap):
    # Generation-aware targets:
    #  - 128 MiB VMEM chips (v5e/v6e): 512-wide tiles on both axes (fewer grid steps,
    #    2x larger weight DMAs; tm=512 is past the compute/BW crossover on v5e and
    #    close to it on v6e).
    #  - 64 MiB chips (v7x): keep th=256 and grow tm in preference (f32 intermediates
    #    and weight double-buffers scale with th; x/out/acc are shared across h steps).
    if vmem_cap > 96 * 1024 * 1024:
        tm_t, th_t = 512, 512
    else:
        tm_t, th_t = 512, 256

    def usage(tm, th):
        dbuf_in = 2 * (tm * E + 2 * E * th + th * E) * itemsize   # x, w12, w3 double-buffered
        dbuf_out = 2 * tm * E * itemsize
        acc = tm * E * 4
        interm = 3 * tm * th * 4                                  # h1, h2, gated (f32)
        return dbuf_in + dbuf_out + acc + interm

    budget = int(vmem_cap * 0.75 * 0.8)   # vmem_limit * headroom for Mosaic scratch
    while True:
        tm = _pick_tile(M, tm_t, 8)       # sublane-aligned (second-to-last dim of x/out)
        th = _pick_tile(H, th_t, 128)     # lane-aligned (last dim of w12, row dim of w3)
        if usage(tm, th) <= budget:
            return tm, th
        if th_t > 128:
            th_t //= 2
        elif tm_t > 8:
            tm_t //= 2
        else:
            return tm, th


@functools.partial(jax.jit, static_argnames=("tm", "th", "vmem_limit"))
def _ffn_2d(x2d, w12, w3t, *, tm, th, vmem_limit):
    M, E = x2d.shape
    H = w3t.shape[0]
    grid = (M // tm, H // th)
    itemsize = x2d.dtype.itemsize
    cost = pl.CostEstimate(
        flops=6 * M * E * H,
        transcendentals=M * H,
        bytes_accessed=int((2 * M * E + 3 * E * H * (M // tm)) * itemsize),
    )
    return pl.pallas_call(
        _ffn_kernel,
        out_shape=jax.ShapeDtypeStruct((M, E), x2d.dtype),
        grid_spec=pltpu.PrefetchScalarGridSpec(
            num_scalar_prefetch=0,
            grid=grid,
            in_specs=[
                pl.BlockSpec((tm, E), lambda m, h: (m, 0)),        # x (constant over h)
                pl.BlockSpec((2, E, th), lambda m, h: (0, 0, h)),  # packed fc1/fc2 tile
                pl.BlockSpec((th, E), lambda m, h: (h, 0)),        # fc3 tile
            ],
            out_specs=pl.BlockSpec((tm, E), lambda m, h: (m, 0)),
            scratch_shapes=[pltpu.VMEM((tm, E), jnp.float32)],
        ),
        compiler_params=pltpu.CompilerParams(
            dimension_semantics=("parallel", "arbitrary"),
            vmem_limit_bytes=vmem_limit,
        ),
        cost_estimate=cost,
    )(x2d, w12, w3t)


def pack_ffn_weights(w1t, w2t):
    """One-time host-side packing of the pre-transposed fc1/fc2 weights ([E, H] each,
    i.e. torch nn.Linear weight.T) into a single (2, E, H) array so each grid step
    issues one fused weight DMA instead of two."""
    return jnp.stack([w1t, w2t], axis=0)


def feed_forward(x, w12, w3t):
    """SwiGLU FFN: fc3( silu(fc1(x)) * fc2(x) ).

    x:    [B, T, E]
    w12:  [2, E, H]  packed fc1/fc2 weights (see pack_ffn_weights)
    w3t:  [H, E]     pre-transposed fc3 weight
    """
    B, T, E = x.shape
    M = B * T
    H = w3t.shape[0]
    x2d = x.reshape(M, E)
    vmem_cap = _vmem_capacity_bytes()
    tm, th = _plan_tiles(M, E, H, x.dtype.itemsize, vmem_cap)
    vmem_limit = min(int(vmem_cap * 0.75), 112 * 1024 * 1024)
    out2d = _ffn_2d(x2d, w12, w3t, tm=tm, th=th, vmem_limit=vmem_limit)
    return out2d.reshape(B, T, E)


if __name__ == "__main__":
    # Small, MXU/vreg-friendly config: E=128 (lane-dense output), H=512 so the H axis
    # exercises the packed-weight / accumulator path (grid collapses to full-dim tiles
    # at this size; realistic sizes pick 256/512 tiles per the plan above).
    cfg = {"emb_dim": 128, "hidden_dim": 512, "dtype": jnp.bfloat16}
    B, T = 2, 8
    E, H, dtype = cfg["emb_dim"], cfg["hidden_dim"], cfg["dtype"]

    key = jax.random.PRNGKey(0)
    kx, k1, k2, k3 = jax.random.split(key, 4)

    x = jax.random.normal(kx, (B, T, E), dtype=jnp.float32).astype(dtype)
    # Parameters stored as [in, out] (torch weight.T), packed once — nothing on the
    # per-call hot path.
    w1t = (jax.random.normal(k1, (E, H), jnp.float32) * 0.02).astype(dtype)
    w2t = (jax.random.normal(k2, (E, H), jnp.float32) * 0.02).astype(dtype)
    w3t = (jax.random.normal(k3, (H, E), jnp.float32) * 0.02).astype(dtype)
    w12 = pack_ffn_weights(w1t, w2t)

    out = feed_forward(x, w12, w3t)
    jax.block_until_ready(out)

    # Plain-JAX reference with identical numerics (bf16 MXU matmuls, f32 accumulation,
    # f32 gating, bf16 cast of the gated slab before fc3).
    x2d = x.reshape(B * T, E)
    h1 = jnp.dot(x2d, w1t, preferred_element_type=jnp.float32)
    h2 = jnp.dot(x2d, w2t, preferred_element_type=jnp.float32)
    gated = (h1 * jax.nn.sigmoid(h1) * h2).astype(dtype)
    ref = jnp.dot(gated, w3t, preferred_element_type=jnp.float32).reshape(B, T, E)

    assert out.shape == (B, T, E)
    assert out.dtype == dtype
    assert jnp.allclose(out.astype(jnp.float32), ref, atol=1e-2, rtol=5e-2), (
        float(jnp.max(jnp.abs(out.astype(jnp.float32) - ref))))

    print("KERNEL_OK")
</pallas_src>

<mosaic_0001>
module attributes {stable_mosaic.version = 11 : i64} {
  func.func @_ffn_kernel(%arg0: i32, %arg1: i32, %arg2: memref<16x128xbf16, #tpu.memory_space<vmem>>, %arg3: memref<2x128x256xbf16, #tpu.memory_space<vmem>>, %arg4: memref<256x128xbf16, #tpu.memory_space<vmem>>, %arg5: memref<16x128xbf16, #tpu.memory_space<vmem>>, %arg6: memref<16x128xf32, #tpu.memory_space<vmem>>) attributes {dimension_semantics = [#tpu.dimension_semantics<parallel>, #tpu.dimension_semantics<arbitrary>], iteration_bounds = array<i64: 1, 2>, scalar_prefetch = 0 : i64, scratch_operands = 1 : i64, tpu.core_type = #tpu.core_type<tc>, window_params = [{transform_indices = @transform_0, window_bounds = array<i64: 16, 128>}, {transform_indices = @transform_1, window_bounds = array<i64: 2, 128, 256>}, {transform_indices = @transform_2, window_bounds = array<i64: 256, 128>}, {transform_indices = @transform_3, window_bounds = array<i64: 16, 128>}]} {
    %c0_i32 = arith.constant 0 : i32
    %0 = arith.cmpi eq, %arg1, %c0_i32 : i32
    %1 = arith.extui %0 : i1 to i32
    %c0_i32_0 = arith.constant 0 : i32
    %2 = arith.cmpi ne, %1, %c0_i32_0 : i32
    scf.if %2 {
      %cst_17 = arith.constant 0.000000e+00 : f32
      %26 = vector.broadcast %cst_17 : f32 to vector<16x128xf32>
      %c0_18 = arith.constant 0 : index
      %c0_19 = arith.constant 0 : index
      %27 = vector.load %arg6[%c0_18, %c0_19] : memref<16x128xf32, #tpu.memory_space<vmem>>, vector<16x128xf32>
      tpu.vector_store %arg6[%c0_18, %c0_19], %26 {strides = array<i32>} : memref<16x128xf32, #tpu.memory_space<vmem>>, vector<16x128xf32>,
    } else {
    }
    %c0 = arith.constant 0 : index
    %c0_1 = arith.constant 0 : index
    %3 = vector.load %arg2[%c0, %c0_1] : memref<16x128xbf16, #tpu.memory_space<vmem>>, vector<16x128xbf16>
    %c0_2 = arith.constant 0 : index
    %c0_3 = arith.constant 0 : index
    %c0_4 = arith.constant 0 : index
    %4 = vector.load %arg3[%c0_2, %c0_3, %c0_4] : memref<2x128x256xbf16, #tpu.memory_space<vmem>>, vector<1x128x256xbf16>
    %5 = vector.shape_cast %4 : vector<1x128x256xbf16> to vector<128x256xbf16>
    %cst = arith.constant dense<0.000000e+00> : vector<16x256xf32>
    %6 = tpu.matmul %3, %5, %cst {dimension_numbers = #tpu.dot_dimension_numbers<[1], [0], [0], [1], [0, 0, 1, 1], [], []>} : vector<16x128xbf16>, vector<128x256xbf16>, vector<16x256xf32> -> vector<16x256xf32>
    %c1 = arith.constant 1 : index
    %c0_5 = arith.constant 0 : index
    %c0_6 = arith.constant 0 : index
    %7 = vector.load %arg3[%c1, %c0_5, %c0_6] : memref<2x128x256xbf16, #tpu.memory_space<vmem>>, vector<1x128x256xbf16>
    %8 = vector.shape_cast %7 : vector<1x128x256xbf16> to vector<128x256xbf16>
    %cst_7 = arith.constant dense<0.000000e+00> : vector<16x256xf32>
    %9 = tpu.matmul %3, %8, %cst_7 {dimension_numbers = #tpu.dot_dimension_numbers<[1], [0], [0], [1], [0, 0, 1, 1], [], []>} : vector<16x128xbf16>, vector<128x256xbf16>, vector<16x256xf32> -> vector<16x256xf32>
    %10 = arith.negf %6 : vector<16x256xf32>
    %11 = math.exp %10 : vector<16x256xf32>
    %cst_8 = arith.constant 1.000000e+00 : f32
    %12 = vector.broadcast %cst_8 : f32 to vector<16x256xf32>
    %13 = arith.addf %12, %11 : vector<16x256xf32>
    %14 = arith.divf %12, %13 : vector<16x256xf32>
    %15 = arith.mulf %6, %14 : vector<16x256xf32>
    %16 = arith.mulf %15, %9 : vector<16x256xf32>
    %c0_9 = arith.constant 0 : index
    %c0_10 = arith.constant 0 : index
    %17 = vector.load %arg6[%c0_9, %c0_10] : memref<16x128xf32, #tpu.memory_space<vmem>>, vector<16x128xf32>
    %18 = arith.truncf %16 : vector<16x256xf32> to vector<16x256xbf16>
    %c0_11 = arith.constant 0 : index
    %c0_12 = arith.constant 0 : index
    %19 = vector.load %arg4[%c0_11, %c0_12] : memref<256x128xbf16, #tpu.memory_space<vmem>>, vector<256x128xbf16>
    %cst_13 = arith.constant dense<0.000000e+00> : vector<16x128xf32>
    %20 = tpu.matmul %18, %19, %cst_13 {dimension_numbers = #tpu.dot_dimension_numbers<[1], [0], [0], [1], [0, 0, 1, 1], [], []>} : vector<16x256xbf16>, vector<256x128xbf16>, vector<16x128xf32> -> vector<16x128xf32>
    %21 = arith.addf %17, %20 : vector<16x128xf32>
    %c0_14 = arith.constant 0 : index
    %c0_15 = arith.constant 0 : index
    %22 = vector.load %arg6[%c0_14, %c0_15] : memref<16x128xf32, #tpu.memory_space<vmem>>, vector<16x128xf32>
    tpu.vector_store %arg6[%c0_14, %c0_15], %21 {strides = array<i32>} : memref<16x128xf32, #tpu.memory_space<vmem>>, vector<16x128xf32>,
    %c1_i32 = arith.constant 1 : i32
    %23 = arith.cmpi eq, %arg1, %c1_i32 : i32
    %24 = arith.extui %23 : i1 to i32
    %c0_i32_16 = arith.constant 0 : i32
    %25 = arith.cmpi ne, %24, %c0_i32_16 : i32
    scf.if %25 {
      %c0_17 = arith.constant 0 : index
      %c0_18 = arith.constant 0 : index
      %26 = vector.load %arg6[%c0_17, %c0_18] : memref<16x128xf32, #tpu.memory_space<vmem>>, vector<16x128xf32>
      %27 = arith.truncf %26 : vector<16x128xf32> to vector<16x128xbf16>
      %c0_19 = arith.constant 0 : index
      %c0_20 = arith.constant 0 : index
      %28 = vector.load %arg5[%c0_19, %c0_20] : memref<16x128xbf16, #tpu.memory_space<vmem>>, vector<16x128xbf16>
      tpu.vector_store %arg5[%c0_19, %c0_20], %27 {strides = array<i32>} : memref<16x128xbf16, #tpu.memory_space<vmem>>, vector<16x128xbf16>,
    } else {
    }
    return
  }
  func.func @transform_0(%arg0: i32, %arg1: i32) -> (i32, i32) {
    %c0_i32 = arith.constant 0 : i32
    %c0_i32_0 = arith.constant 0 : i32
    return %arg0, %c0_i32 : i32, i32
  }
  func.func @transform_1(%arg0: i32, %arg1: i32) -> (i32, i32, i32) {
    %c0_i32 = arith.constant 0 : i32
    %c0_i32_0 = arith.constant 0 : i32
    %c0_i32_1 = arith.constant 0 : i32
    return %c0_i32, %c0_i32_0, %arg1 : i32, i32, i32
  }
  func.func @transform_2(%arg0: i32, %arg1: i32) -> (i32, i32) {
    %c0_i32 = arith.constant 0 : i32
    %c0_i32_0 = arith.constant 0 : i32
    return %arg1, %c0_i32 : i32, i32
  }
  func.func @transform_3(%arg0: i32, %arg1: i32) -> (i32, i32) {
    %c0_i32 = arith.constant 0 : i32
    %c0_i32_0 = arith.constant 0 : i32
    return %arg0, %c0_i32 : i32, i32
  }
}

</mosaic_0001>

<llo_original>
// kernel: _ffn_2d.1
$region0: #{_ffn_2d.1}
  #allocation0 [shape = 'u32[]', space=smem, size = 0x4, offset = 0x4, fixed_abs, tag = 'smem constant byte address 0x4 - core index']
  #allocation1 [shape = 'u32[144,128]{1,0:T(1,128)}', space=vmem, size = 0x12000, scoped, tag = 'internal scratch']
  #allocation2 [shape = 'f32[16,128]{1,0:T(8,128)}', space=vmem, size = 0x2000, scoped, tag = 'scratch operand']
  %s0 = inlined_call_operand.hbm [shape: bf16[16,128], index: 0, kind: input, shape index: {}]
  %s1 = inlined_call_operand.hbm [shape: bf16[2,128,512], index: 1, kind: input, shape index: {}]
  %s2 = inlined_call_operand.hbm [shape: bf16[512,128], index: 2, kind: input, shape index: {}]
  %s3 = inlined_call_operand.hbm [shape: bf16[16,128], index: 3, kind: output, shape index: {}]
  %s4 = sld [smem:[#allocation0]]
  $region65: #{_ffn_2d.1} parent=0
    _
  %s6 = ssub.s32 1, %s4
  %s7 = scalar_select 0, %s6, %s4
  $region1: #{_ffn_2d.1} parent=0
    #allocation3 [shape = 'u8[4096]{0}', space=vmem, size = 0x1000, scoped, tag = 'input window, operand 0, single buffered']
    #allocation4 [shape = 's32[2]{0}', space=sflag, size = 0x8, scoped, tag = 'scoped memory for _ffn_2d.1']
    #allocation5 [shape = 's32[2]{0}', space=sflag, size = 0x8, scoped, tag = 'scoped memory for _ffn_2d.1']
    #allocation6 [shape = 'u8[262144]{0}', space=vmem, size = 0x40000, scoped, tag = 'input window, operand 1']
    #allocation7 [shape = 's32[2]{0}', space=sflag, size = 0x8, scoped, tag = 'scoped memory for _ffn_2d.1']
    #allocation8 [shape = 'u8[131072]{0}', space=vmem, size = 0x20000, scoped, tag = 'input window, operand 2']
    #allocation9 [shape = 'u8[4096]{0}', space=vmem, size = 0x1000, scoped, tag = 'output window, operand 0, single buffered']
    %8 = vsyncpa [#allocation4], 0
    %9 = vsyncpa [#allocation7], 0
    %s10 = scalar_lea.sflag [#allocation7], 1
    %11 = vsyncpa %s10, 0
    %12 = vsyncpa [#allocation5], 0
    loop: start=0, step=1, limit=4
    $region2: #{_ffn_2d.1} parent=1 // loop_pre_header
      _
    $region3: #{_ffn_2d.1} parent=1 // loop_header
      %s14 = sphi 0, %s18
      %p15 = scmp.ge.s32.totalorder %s14, 4
      %s21 = sphi 0, %s33
      %s22 = sphi 0, %s29
      %s23 = sphi 0, %s21
      %s24 = sphi 0, %s22
      %s25 = sphi 0, %s23
      %s26 = sphi 0, %s24
      %s36 = sphi 0, %s38
      %s39 = sphi 0, %s36
      %s40 = sphi 0, %s39
      %s56 = sphi 0, %s40
      %s62 = sphi 0, %s64
      %s65 = sphi 0, %s62
      %s66 = sphi 0, %s65
      %s82 = sphi 0, %s66
      %s88 = sphi 0, %s90
      %s91 = sphi 0, %s88
      %s92 = sphi 0, %s91
      %s108 = sphi 0, %s92
      %s114 = sphi 0, %s116
      %s117 = sphi 0, %s114
      %s118 = sphi 0, %s117
      %s134 = sphi 0, %s118
    $region4: #{_ffn_2d.1} parent=1 // loop_header_branch
      %17 = sbr.rel (%p15) target = $region8
    $region5: #{_ffn_2d.1} parent=1 // loop_body
      %s19 = ssub.s32 %s14, 1
      %s20 = ssub.s32 %s14, 2
      %s27 = sadd.s32 1, %s22
      %p28 = scmp.ge.s32.totalorder %s27, 2
      %s29 = scalar_select %p28, 0, %s27
      %s30 = sadd.s32 1, %s21
      %s31 = scalar_select %p28, %s30, %s21
      %p32 = scmp.ge.s32.totalorder %s31, 1
      %s33 = scalar_select %p32, 0, %s31
      %s34 = ssub.s32 %s21, %s33
      %p35 = scmp.eq.s32.totalorder %s34, 0
      %s37 = sadd.s32 %s36, 1
      %s38 = scalar_select %p35, %s36, %s37
      %p41 = pneg %p35
      %p42 = scmp.eq.s32.totalorder %s14, 1
      %p43 = por %p41, %p42
      %p44 = scmp.ne.s32.totalorder %s36, %s39
      %p45 = scmp.eq.s32.totalorder %s14, 0
      %p46 = por %p44, %p45
      %p47 = scmp.ne.s32.totalorder %s36, %s39
      %p48 = scmp.eq.s32.totalorder %s19, 1
      %p49 = por %p47, %p48
      %p50 = scmp.ne.s32.totalorder %s39, %s40
      %p51 = scmp.eq.s32.totalorder %s19, 0
      %p52 = por %p50, %p51
      %p53 = scmp.ne.s32.totalorder %s39, %s40
      %p54 = scmp.eq.s32.totalorder %s20, 1
      %p55 = por %p53, %p54
      %p57 = scmp.ne.s32.totalorder %s40, %s56
      %p58 = scmp.eq.s32.totalorder %s20, 0
      %p59 = por %p57, %p58
      %s60 = ssub.s32 %s22, %s29
      %p61 = scmp.eq.s32.totalorder %s60, 0
      %s63 = sadd.s32 %s62, 1
      %s64 = scalar_select %p61, %s62, %s63
      %p67 = pneg %p61
      %p68 = scmp.eq.s32.totalorder %s14, 1
      %p69 = por %p67, %p68
      %p70 = scmp.ne.s32.totalorder %s62, %s65
      %p71 = scmp.eq.s32.totalorder %s14, 0
      %p72 = por %p70, %p71
      %p73 = scmp.ne.s32.totalorder %s62, %s65
      %p74 = scmp.eq.s32.totalorder %s19, 1
      %p75 = por %p73, %p74
      %p76 = scmp.ne.s32.totalorder %s65, %s66
      %p77 = scmp.eq.s32.totalorder %s19, 0
      %p78 = por %p76, %p77
      %p79 = scmp.ne.s32.totalorder %s65, %s66
      %p80 = scmp.eq.s32.totalorder %s20, 1
      %p81 = por %p79, %p80
      %p83 = scmp.ne.s32.totalorder %s66, %s82
      %p84 = scmp.eq.s32.totalorder %s20, 0
      %p85 = por %p83, %p84
      %s86 = ssub.s32 %s22, %s29
      %p87 = scmp.eq.s32.totalorder %s86, 0
      %s89 = sadd.s32 %s88, 1
      %s90 = scalar_select %p87, %s88, %s89
      %p93 = pneg %p87
      %p94 = scmp.eq.s32.totalorder %s14, 1
      %p95 = por %p93, %p94
      %p96 = scmp.ne.s32.totalorder %s88, %s91
      %p97 = scmp.eq.s32.totalorder %s14, 0
      %p98 = por %p96, %p97
      %p99 = scmp.ne.s32.totalorder %s88, %s91
      %p100 = scmp.eq.s32.totalorder %s19, 1
      %p101 = por %p99, %p100
      %p102 = scmp.ne.s32.totalorder %s91, %s92
      %p103 = scmp.eq.s32.totalorder %s19, 0
      %p104 = por %p102, %p103
      %p105 = scmp.ne.s32.totalorder %s91, %s92
      %p106 = scmp.eq.s32.totalorder %s20, 1
      %p107 = por %p105, %p106
      %p109 = scmp.ne.s32.totalorder %s92, %s108
      %p110 = scmp.eq.s32.totalorder %s20, 0
      %p111 = por %p109, %p110
      %s112 = ssub.s32 %s21, %s33
      %p113 = scmp.eq.s32.totalorder %s112, 0
      %s115 = sadd.s32 %s114, 1
      %s116 = scalar_select %p113, %s114, %s115
      %p119 = pneg %p113
      %p120 = scmp.eq.s32.totalorder %s14, 1
      %p121 = por %p119, %p120
      %p122 = scmp.ne.s32.totalorder %s114, %s117
      %p123 = scmp.eq.s32.totalorder %s14, 0
      %p124 = por %p122, %p123
      %p125 = scmp.ne.s32.totalorder %s114, %s117
      %p126 = scmp.eq.s32.totalorder %s19, 1
      %p127 = por %p125, %p126
      %p128 = scmp.ne.s32.totalorder %s117, %s118
      %p129 = scmp.eq.s32.totalorder %s19, 0
      %p130 = por %p128, %p129
      %p131 = scmp.ne.s32.totalorder %s117, %s118
      %p132 = scmp.eq.s32.totalorder %s20, 1
      %p133 = por %p131, %p132
      %p135 = scmp.ne.s32.totalorder %s118, %s134
      %p136 = scmp.eq.s32.totalorder %s20, 0
      %p137 = por %p135, %p136
      %p138 = scmp.le.s32.totalorder 1, %s14
      %p139 = scmp.lt.s32.totalorder %s14, 3
      %p140 = pnand %p138, %p139
      %p141 = pneg %p140
      // Predicated region
      $region9: #{_ffn_2d.1} parent=5 // pred_check
        _
      $region10: #{_ffn_2d.1} parent=5 // pred_check_branch
        %143 = sbr.rel (%p140) target = $region12
      $region11: #{_ffn_2d.1} parent=5 // pred_region
        %s144 = ssub.s32 %s14, 1
        // Predicated region
        $region13: #{_ffn_2d.1} parent=11 // pred_check
          %p145 = pneg %p52
        $region14: #{_ffn_2d.1} parent=11 // pred_check_branch
          %147 = sbr.rel (%p145) target = $region16
        $region15: #{_ffn_2d.1} parent=11 // pred_region
          %s148 = smul.u32 2, %s23
          %s150 = ssub.s32 128, 128
          %151 = vsyncadd [#allocation4], %s150
          %s152 = smul.addr %s148, 64
          %s153 = scalar_lea.hbm %s0, %s152
          %s154 = sshll.u32 [#allocation3], 4
          %s155 = int_to_ptr.vmem [resolvable:$true] %s154
          %160 = dma.hbm_to_vmem [thread:$0]  %s153, 128, %s155, [#allocation4], 64, 64, 4
        $region16: #{_ffn_2d.1} parent=11 // pred_fallthru
          _
      $region12: #{_ffn_2d.1} parent=5 // pred_fallthru
        _
      %p161 = scmp.lt.s32.totalorder %s14, 2
      // Predicated region
      $region17: #{_ffn_2d.1} parent=5 // pred_check
        %p162 = pneg %p161
      $region18: #{_ffn_2d.1} parent=5 // pred_check_branch
        %164 = sbr.rel (%p162) target = $region20
      $region19: #{_ffn_2d.1} parent=5 // pred_region
        // Predicated region
        $region21: #{_ffn_2d.1} parent=19 // pred_check
          %p165 = pneg %p72
        $region22: #{_ffn_2d.1} parent=19 // pred_check_branch
          %167 = sbr.rel (%p165) target = $region24
        $region23: #{_ffn_2d.1} parent=19 // pred_region
          %s168 = sand.u32 %s14, 1
          %s169 = scalar_lea.sflag [#allocation7], %s168
          %s170 = sand.u32 %s62, 1
          %s171 = smul.addr %s170, 256
          %s172 = scalar_lea.vmem [#allocation6], %s171
          %s173 = smul.u32 2, %s22
          %s175 = ssub.s32 4096, 4096
          %176 = vsyncadd %s169, %s175
          %s177 = smul.addr %s173, 64
          %s178 = scalar_lea.hbm %s1, %s177
          %s179 = sshll.u32 %s172, 4
          %s180 = int_to_ptr.vmem [resolvable:$true] %s179
          %185 = dma.hbm_to_vmem [thread:$0]  %s178, 4096, %s180, %s169, 256, 128, 8
        $region24: #{_ffn_2d.1} parent=19 // pred_fallthru
          _
        // Predicated region
        $region25: #{_ffn_2d.1} parent=19 // pred_check
          %p186 = pneg %p98
        $region26: #{_ffn_2d.1} parent=19 // pred_check_branch
          %188 = sbr.rel (%p186) target = $region28
        $region27: #{_ffn_2d.1} parent=19 // pred_region
          %s189 = sand.u32 %s14, 1
          %s190 = scalar_lea.sflag [#allocation7], %s189
          %s191 = sand.u32 %s88, 1
          %s192 = smul.addr %s191, 128
          %s193 = scalar_lea.vmem [#allocation8], %s192
          %s194 = smul.u32 32, %s22
          %s196 = ssub.s32 2048, 2048
          %197 = vsyncadd %s190, %s196
          %s198 = smul.addr %s194, 64
          %s199 = scalar_lea.hbm %s2, %s198
          %s200 = sshll.u32 %s193, 4
          %s201 = int_to_ptr.vmem [resolvable:$true] %s200
          %206 = dma.hbm_to_vmem [thread:$0]  %s199, 2048, %s201, %s190, 64, 64, 4
        $region28: #{_ffn_2d.1} parent=19 // pred_fallthru
          _
      $region20: #{_ffn_2d.1} parent=5 // pred_fallthru
        _
      %p207 = scmp.le.s32.totalorder 1, %s14
      %p208 = scmp.lt.s32.totalorder %s14, 3
      %p209 = pnand %p207, %p208
      %p210 = pneg %p209
      // Predicated region
      $region29: #{_ffn_2d.1} parent=5 // pred_check
        _
      $region30: #{_ffn_2d.1} parent=5 // pred_check_branch
        %212 = sbr.rel (%p209) target = $region32
      $region31: #{_ffn_2d.1} parent=5 // pred_region
        %s213 = ssub.s32 %s14, 1
        // Predicated region
        $region33: #{_ffn_2d.1} parent=31 // pred_check
          %p214 = pneg %p52
        $region34: #{_ffn_2d.1} parent=31 // pred_check_branch
          %216 = sbr.rel (%p214) target = $region36
        $region35: #{_ffn_2d.1} parent=31 // pred_region
          %217 = dma.done [#allocation4], 128
        $region36: #{_ffn_2d.1} parent=31 // pred_fallthru
          _
        %s218 = sand.u32 %s19, 1
        %s219 = scalar_lea.sflag [#allocation7], %s218
        %s220 = sand.u32 %s65, 1
        %s221 = smul.addr %s220, 256
        %s222 = scalar_lea.vmem [#allocation6], %s221
        // Predicated region
        $region37: #{_ffn_2d.1} parent=31 // pred_check
          %p223 = pneg %p78
        $region38: #{_ffn_2d.1} parent=31 // pred_check_branch
          %225 = sbr.rel (%p223) target = $region40
        $region39: #{_ffn_2d.1} parent=31 // pred_region
          %226 = dma.done %s219, 4096
        $region40: #{_ffn_2d.1} parent=31 // pred_fallthru
          _
        %s227 = sand.u32 %s19, 1
        %s228 = scalar_lea.sflag [#allocation7], %s227
        %s229 = sand.u32 %s91, 1
        %s230 = smul.addr %s229, 128
        %s231 = scalar_lea.vmem [#allocation8], %s230
        // Predicated region
        $region41: #{_ffn_2d.1} parent=31 // pred_check
          %p232 = pneg %p104
        $region42: #{_ffn_2d.1} parent=31 // pred_check_branch
          %234 = sbr.rel (%p232) target = $region44
        $region43: #{_ffn_2d.1} parent=31 // pred_region
          %235 = dma.done %s228, 2048
        $region44: #{_ffn_2d.1} parent=31 // pred_fallthru
          _
        %p236 = pneg %p52
        %p237 = pneg %p49
        %s238 = sand.u32 %s19, 1
        %s239 = scalar_lea.sflag [#allocation7], %s238
        %s240 = sand.u32 %s65, 1
        %s241 = smul.addr %s240, 256
        %s242 = scalar_lea.vmem [#allocation6], %s241
        %p243 = pneg %p78
        %p244 = pneg %p75
        %s245 = sand.u32 %s19, 1
        %s246 = scalar_lea.sflag [#allocation7], %s245
        %s247 = sand.u32 %s91, 1
        %s248 = smul.addr %s247, 128
        %s249 = scalar_lea.vmem [#allocation8], %s248
        %p250 = pneg %p104
        %p251 = pneg %p101
        %p252 = pneg %p130
        %p253 = pneg %p127
        %s254 = smul.u32 2, %s23
        %s255 = smul.u32 2, %s24
        %s256 = smul.u32 32, %s24
        %s257 = smul.u32 2, %s23
        %p259 = scmp.eq.s32.totalorder %s24, 0
        // Predicated region
        $region45: #{_ffn_2d.1} parent=31 // pred_check
          %p260 = pneg %p259
        $region46: #{_ffn_2d.1} parent=31 // pred_check_branch
          %262 = sbr.rel (%p260) target = $region48
        $region47: #{_ffn_2d.1} parent=31 // pred_region
          %263 = vst [vmem:[#allocation2] sm:$0xff] 0.0
          %264 = vst [vmem:[#allocation2 + $0x8] sm:$0xff] 0.0
        $region48: #{_ffn_2d.1} parent=31 // pred_fallthru
          _
        %v265 = vld [vmem:[#allocation3] sm:$0xf]
        %v266 = vld [vmem:[#allocation3 + $0x4] sm:$0xf]
        %v267 = vld [vmem:[%s222] sm:$0xff]
        %v268 = vld [vmem:[%s222 + $0x8] sm:$0xff]
        %v269 = vld [vmem:[%s222 + $0x10] sm:$0xff]
        %v270 = vld [vmem:[%s222 + $0x18] sm:$0xff]
        %v271 = vld [vmem:[%s222 + $0x20] sm:$0xff]
        %v272 = vld [vmem:[%s222 + $0x28] sm:$0xff]
        %v273 = vld [vmem:[%s222 + $0x30] sm:$0xff]
        %v274 = vld [vmem:[%s222 + $0x38] sm:$0xff]
        %v275 = vld [vmem:[%s222 + $0x40] sm:$0xff]
        %v276 = vld [vmem:[%s222 + $0x48] sm:$0xff]
        %v277 = vld [vmem:[%s222 + $0x50] sm:$0xff]
        %v278 = vld [vmem:[%s222 + $0x58] sm:$0xff]
        %v279 = vld [vmem:[%s222 + $0x60] sm:$0xff]
        %v280 = vld [vmem:[%s222 + $0x68] sm:$0xff]
        %v281 = vld [vmem:[%s222 + $0x70] sm:$0xff]
        %v282 = vld [vmem:[%s222 + $0x78] sm:$0xff]
        %v285 = vunpack.c.l.b16 %v265
        %v286 = vunpack.c.l.b16 %v266
        %v287 = vpack.c.b16 %v286, %v285
        %v305 = vunpack.c.l.b16 %v267
        %v306 = vunpack.c.h.b16 %v267
        %v307 = vunpack.c.l.b16 %v268
        %v308 = vunpack.c.h.b16 %v268
        %v309 = vunpack.c.l.b16 %v269
        %v310 = vunpack.c.h.b16 %v269
        %v311 = vunpack.c.l.b16 %v270
        %v312 = vunpack.c.h.b16 %v270
        %v313 = vunpack.c.l.b16 %v271
        %v314 = vunpack.c.h.b16 %v271
        %v315 = vunpack.c.l.b16 %v272
        %v316 = vunpack.c.h.b16 %v272
        %v317 = vunpack.c.l.b16 %v273
        %v318 = vunpack.c.h.b16 %v273
        %v319 = vunpack.c.l.b16 %v274
        %v320 = vunpack.c.h.b16 %v274
        %v321 = vunpack.c.l.b16 %v275
        %v322 = vunpack.c.h.b16 %v275
        %v323 = vunpack.c.l.b16 %v276
        %v324 = vunpack.c.h.b16 %v276
        %v325 = vunpack.c.l.b16 %v277
        %v326 = vunpack.c.h.b16 %v277
        %v327 = vunpack.c.l.b16 %v278
        %v328 = vunpack.c.h.b16 %v278
        %v329 = vunpack.c.l.b16 %v279
        %v330 = vunpack.c.h.b16 %v279
        %v331 = vunpack.c.l.b16 %v280
        %v332 = vunpack.c.h.b16 %v280
        %v333 = vunpack.c.l.b16 %v281
        %v334 = vunpack.c.h.b16 %v281
        %v335 = vunpack.c.l.b16 %v282
        %v336 = vunpack.c.h.b16 %v282
        %v337 = vpack.c.b16 %v307, %v305
        %v338 = vpack.c.b16 %v308, %v306
        %v339 = vpack.c.b16 %v311, %v309
        %v340 = vpack.c.b16 %v312, %v310
        %v341 = vpack.c.b16 %v315, %v313
        %v342 = vpack.c.b16 %v316, %v314
        %v343 = vpack.c.b16 %v319, %v317
        %v344 = vpack.c.b16 %v320, %v318
        %v345 = vpack.c.b16 %v323, %v321
        %v346 = vpack.c.b16 %v324, %v322
        %v347 = vpack.c.b16 %v327, %v325
        %v348 = vpack.c.b16 %v328, %v326
        %v349 = vpack.c.b16 %v331, %v329
        %v350 = vpack.c.b16 %v332, %v330
        %v351 = vpack.c.b16 %v335, %v333
        %v352 = vpack.c.b16 %v336, %v334
        %369 = vmatprep.subr.bf16.mxu0 %v352
        %370 = vmatpush1.bf16.msra.mxu0 %v351
        %371 = vmatprep.subr.bf16.mxu0 %v350
        %372 = vmatpush1.bf16.msra.mxu0 %v349
        %373 = vmatprep.subr.bf16.mxu0 %v348
        %374 = vmatpush1.bf16.msra.mxu0 %v347
        %375 = vmatprep.subr.bf16.mxu0 %v346
        %376 = vmatpush1.bf16.msra.mxu0 %v345
        %377 = vmatprep.subr.bf16.mxu0 %v344
        %378 = vmatpush1.bf16.msra.mxu0 %v343
        %379 = vmatprep.subr.bf16.mxu0 %v342
        %380 = vmatpush1.bf16.msra.mxu0 %v341
        %381 = vmatprep.subr.bf16.mxu0 %v340
        %382 = vmatpush1.bf16.msra.mxu0 %v339
        %383 = vmatprep.subr.bf16.mxu0 %v338
        %384 = vmatpush1.bf16.msra.mxu0 %v337
        %385 = vmatprep.subr.bf16.mxu0 0
        %386 = vmatpush2.bf16.msra.mxu0 0
        %387 = vmatprep.subr.bf16.mxu0 0
        %388 = vmatpush2.bf16.msra.mxu0 0
        %389 = vmatprep.subr.bf16.mxu0 0
        %390 = vmatpush2.bf16.msra.mxu0 0
        %391 = vmatprep.subr.bf16.mxu0 0
        %392 = vmatpush2.bf16.msra.mxu0 0
        %393 = vmatprep.subr.bf16.mxu0 0
        %394 = vmatpush2.bf16.msra.mxu0 0
        %395 = vmatprep.subr.bf16.mxu0 0
        %396 = vmatpush2.bf16.msra.mxu0 0
        %397 = vmatprep.subr.bf16.mxu0 0
        %398 = vmatpush2.bf16.msra.mxu0 0
        %399 = vmatprep.subr.bf16.mxu0 0
        %400 = vmatpush2.bf16.msra.mxu0 0
        %401 = vmatprep.mubr.bf16.mxu0 0
        %402 = vmatmul.mubr.bf16.gmra.mxu0 %v287
        %v403 = vpop.f32.mrf.mxu0
        %v404 = vadd.f32 0.0, %v403
        %v405 = vpop.f32.mrf.mxu0
        %v406 = vadd.f32 0.0, %v405
        %v407 = vpop.f32.mrf.mxu0
        %v408 = vadd.f32 0.0, %v407
        %v409 = vpop.f32.mrf.mxu0
        %v410 = vadd.f32 0.0, %v409
        %411 = vdwg.mxu0
        %s412 = scalar_lea.vmem %s222, 128 [#allocation6]
        %v413 = vld [vmem:[%s412] sm:$0xff]
        %v414 = vld [vmem:[%s412 + $0x8] sm:$0xff]
        %v415 = vld [vmem:[%s412 + $0x10] sm:$0xff]
        %v416 = vld [vmem:[%s412 + $0x18] sm:$0xff]
        %v417 = vld [vmem:[%s412 + $0x20] sm:$0xff]
        %v418 = vld [vmem:[%s412 + $0x28] sm:$0xff]
        %v419 = vld [vmem:[%s412 + $0x30] sm:$0xff]
        %v420 = vld [vmem:[%s412 + $0x38] sm:$0xff]
        %v421 = vld [vmem:[%s412 + $0x40] sm:$0xff]
        %v422 = vld [vmem:[%s412 + $0x48] sm:$0xff]
        %v423 = vld [vmem:[%s412 + $0x50] sm:$0xff]
        %v424 = vld [vmem:[%s412 + $0x58] sm:$0xff]
        %v425 = vld [vmem:[%s412 + $0x60] sm:$0xff]
        %v426 = vld [vmem:[%s412 + $0x68] sm:$0xff]
        %v427 = vld [vmem:[%s412 + $0x70] sm:$0xff]
        %v428 = vld [vmem:[%s412 + $0x78] sm:$0xff]
        %v445 = vunpack.c.l.b16 %v413
        %v446 = vunpack.c.h.b16 %v413
        %v447 = vunpack.c.l.b16 %v414
        %v448 = vunpack.c.h.b16 %v414
        %v449 = vunpack.c.l.b16 %v415
        %v450 = vunpack.c.h.b16 %v415
        %v451 = vunpack.c.l.b16 %v416
        %v452 = vunpack.c.h.b16 %v416
        %v453 = vunpack.c.l.b16 %v417
        %v454 = vunpack.c.h.b16 %v417
        %v455 = vunpack.c.l.b16 %v418
        %v456 = vunpack.c.h.b16 %v418
        %v457 = vunpack.c.l.b16 %v419
        %v458 = vunpack.c.h.b16 %v419
        %v459 = vunpack.c.l.b16 %v420
        %v460 = vunpack.c.h.b16 %v420
        %v461 = vunpack.c.l.b16 %v421
        %v462 = vunpack.c.h.b16 %v421
        %v463 = vunpack.c.l.b16 %v422
        %v464 = vunpack.c.h.b16 %v422
        %v465 = vunpack.c.l.b16 %v423
        %v466 = vunpack.c.h.b16 %v423
        %v467 = vunpack.c.l.b16 %v424
        %v468 = vunpack.c.h.b16 %v424
        %v469 = vunpack.c.l.b16 %v425
        %v470 = vunpack.c.h.b16 %v425
        %v471 = vunpack.c.l.b16 %v426
        %v472 = vunpack.c.h.b16 %v426
        %v473 = vunpack.c.l.b16 %v427
        %v474 = vunpack.c.h.b16 %v427
        %v475 = vunpack.c.l.b16 %v428
        %v476 = vunpack.c.h.b16 %v428
        %v477 = vpack.c.b16 %v447, %v445
        %v478 = vpack.c.b16 %v448, %v446
        %v479 = vpack.c.b16 %v451, %v449
        %v480 = vpack.c.b16 %v452, %v450
        %v481 = vpack.c.b16 %v455, %v453
        %v482 = vpack.c.b16 %v456, %v454
        %v483 = vpack.c.b16 %v459, %v457
        %v484 = vpack.c.b16 %v460, %v458
        %v485 = vpack.c.b16 %v463, %v461
        %v486 = vpack.c.b16 %v464, %v462
        %v487 = vpack.c.b16 %v467, %v465
        %v488 = vpack.c.b16 %v468, %v466
        %v489 = vpack.c.b16 %v471, %v469
        %v490 = vpack.c.b16 %v472, %v470
        %v491 = vpack.c.b16 %v475, %v473
        %v492 = vpack.c.b16 %v476, %v474
        %509 = vmatprep.subr.bf16.mxu0 %v492
        %510 = vmatpush1.bf16.msra.mxu0 %v491
        %511 = vmatprep.subr.bf16.mxu0 %v490
        %512 = vmatpush1.bf16.msra.mxu0 %v489
        %513 = vmatprep.subr.bf16.mxu0 %v488
        %514 = vmatpush1.bf16.msra.mxu0 %v487
        %515 = vmatprep.subr.bf16.mxu0 %v486
        %516 = vmatpush1.bf16.msra.mxu0 %v485
        %517 = vmatprep.subr.bf16.mxu0 %v484
        %518 = vmatpush1.bf16.msra.mxu0 %v483
        %519 = vmatprep.subr.bf16.mxu0 %v482
        %520 = vmatpush1.bf16.msra.mxu0 %v481
        %521 = vmatprep.subr.bf16.mxu0 %v480
        %522 = vmatpush1.bf16.msra.mxu0 %v479
        %523 = vmatprep.subr.bf16.mxu0 %v478
        %524 = vmatpush1.bf16.msra.mxu0 %v477
        %525 = vmatprep.subr.bf16.mxu0 0
        %526 = vmatpush2.bf16.msra.mxu0 0
        %527 = vmatprep.subr.bf16.mxu0 0
        %528 = vmatpush2.bf16.msra.mxu0 0
        %529 = vmatprep.subr.bf16.mxu0 0
        %530 = vmatpush2.bf16.msra.mxu0 0
        %531 = vmatprep.subr.bf16.mxu0 0
        %532 = vmatpush2.bf16.msra.mxu0 0
        %533 = vmatprep.subr.bf16.mxu0 0
        %534 = vmatpush2.bf16.msra.mxu0 0
        %535 = vmatprep.subr.bf16.mxu0 0
        %536 = vmatpush2.bf16.msra.mxu0 0
        %537 = vmatprep.subr.bf16.mxu0 0
        %538 = vmatpush2.bf16.msra.mxu0 0
        %539 = vmatprep.subr.bf16.mxu0 0
        %540 = vmatpush2.bf16.msra.mxu0 0
        %541 = vmatprep.mubr.bf16.mxu0 0
        %542 = vmatmul.mubr.bf16.gmra.mxu0 %v287
        %v543 = vpop.f32.mrf.mxu0
        %v544 = vadd.f32 0.0, %v543
        %v545 = vpop.f32.mrf.mxu0
        %v546 = vadd.f32 0.0, %v545
        %v547 = vpop.f32.mrf.mxu0
        %v548 = vadd.f32 0.0, %v547
        %v549 = vpop.f32.mrf.mxu0
        %v550 = vadd.f32 0.0, %v549
        %551 = vdwg.mxu0
        %v552 = vxor.u32 %v404, 2147483648
        %v553 = vxor.u32 %v406, 2147483648
        %v554 = vxor.u32 %v408, 2147483648
        %v555 = vxor.u32 %v410, 2147483648
        %v556 = vmul.f32 %v552, 1.442695
        %v557 = vpow.pop %v556
        %v558 = vmul.f32 %v553, 1.442695
        %v559 = vpow.pop %v558
        %v560 = vmul.f32 %v554, 1.442695
        %v561 = vpow.pop %v560
        %v562 = vmul.f32 %v555, 1.442695
        %v563 = vpow.pop %v562
        %v564 = vadd.f32 %v557, 1.0
        %v565 = vadd.f32 %v559, 1.0
        %v566 = vadd.f32 %v561, 1.0
        %v567 = vadd.f32 %v563, 1.0
        %v568 = vrcp.pop %v564
        %v569 = vmul.f32 1.0, %v568
        %v570 = vrcp.pop %v565
        %v571 = vmul.f32 1.0, %v570
        %v572 = vrcp.pop %v566
        %v573 = vmul.f32 1.0, %v572
        %v574 = vrcp.pop %v567
        %v575 = vmul.f32 1.0, %v574
        %v576 = vmul.f32 %v404, %v569
        %v577 = vmul.f32 %v406, %v571
        %v578 = vmul.f32 %v408, %v573
        %v579 = vmul.f32 %v410, %v575
        %v580 = vmul.f32 %v576, %v544
        %v581 = vmul.f32 %v577, %v546
        %v582 = vmul.f32 %v578, %v548
        %v583 = vmul.f32 %v579, %v550
        %v584 = vld [vmem:[#allocation2] sm:$0xff]
        %v585 = vld [vmem:[#allocation2 + $0x8] sm:$0xff]
        %v586 = vpack.c.bf16 %v582, %v580
        %v587 = vpack.c.bf16 %v583, %v581
        %v588 = vld [vmem:[%s231] sm:$0xf]
        %v589 = vld [vmem:[%s231 + $0x4] sm:$0xf]
        %v590 = vld [vmem:[%s231 + $0x8] sm:$0xf]
        %v591 = vld [vmem:[%s231 + $0xc] sm:$0xf]
        %v592 = vld [vmem:[%s231 + $0x10] sm:$0xf]
        %v593 = vld [vmem:[%s231 + $0x14] sm:$0xf]
        %v594 = vld [vmem:[%s231 + $0x18] sm:$0xf]
        %v595 = vld [vmem:[%s231 + $0x1c] sm:$0xf]
        %v596 = vld [vmem:[%s231 + $0x20] sm:$0xf]
        %v597 = vld [vmem:[%s231 + $0x24] sm:$0xf]
        %v598 = vld [vmem:[%s231 + $0x28] sm:$0xf]
        %v599 = vld [vmem:[%s231 + $0x2c] sm:$0xf]
        %v600 = vld [vmem:[%s231 + $0x30] sm:$0xf]
        %v601 = vld [vmem:[%s231 + $0x34] sm:$0xf]
        %v602 = vld [vmem:[%s231 + $0x38] sm:$0xf]
        %v603 = vld [vmem:[%s231 + $0x3c] sm:$0xf]
        %v604 = vld [vmem:[%s231 + $0x40] sm:$0xf]
        %v605 = vld [vmem:[%s231 + $0x44] sm:$0xf]
        %v606 = vld [vmem:[%s231 + $0x48] sm:$0xf]
        %v607 = vld [vmem:[%s231 + $0x4c] sm:$0xf]
        %v608 = vld [vmem:[%s231 + $0x50] sm:$0xf]
        %v609 = vld [vmem:[%s231 + $0x54] sm:$0xf]
        %v610 = vld [vmem:[%s231 + $0x58] sm:$0xf]
        %v611 = vld [vmem:[%s231 + $0x5c] sm:$0xf]
        %v612 = vld [vmem:[%s231 + $0x60] sm:$0xf]
        %v613 = vld [vmem:[%s231 + $0x64] sm:$0xf]
        %v614 = vld [vmem:[%s231 + $0x68] sm:$0xf]
        %v615 = vld [vmem:[%s231 + $0x6c] sm:$0xf]
        %v616 = vld [vmem:[%s231 + $0x70] sm:$0xf]
        %v617 = vld [vmem:[%s231 + $0x74] sm:$0xf]
        %v618 = vld [vmem:[%s231 + $0x78] sm:$0xf]
        %v619 = vld [vmem:[%s231 + $0x7c] sm:$0xf]
        %v652 = vunpack.c.l.b16 %v588
        %v653 = vunpack.c.l.b16 %v589
        %v654 = vunpack.c.l.b16 %v590
        %v655 = vunpack.c.l.b16 %v591
        %v656 = vunpack.c.l.b16 %v592
        %v657 = vunpack.c.l.b16 %v593
        %v658 = vunpack.c.l.b16 %v594
        %v659 = vunpack.c.l.b16 %v595
        %v660 = vunpack.c.l.b16 %v596
        %v661 = vunpack.c.l.b16 %v597
        %v662 = vunpack.c.l.b16 %v598
        %v663 = vunpack.c.l.b16 %v599
        %v664 = vunpack.c.l.b16 %v600
        %v665 = vunpack.c.l.b16 %v601
        %v666 = vunpack.c.l.b16 %v602
        %v667 = vunpack.c.l.b16 %v603
        %v668 = vunpack.c.l.b16 %v604
        %v669 = vunpack.c.l.b16 %v605
        %v670 = vunpack.c.l.b16 %v606
        %v671 = vunpack.c.l.b16 %v607
        %v672 = vunpack.c.l.b16 %v608
        %v673 = vunpack.c.l.b16 %v609
        %v674 = vunpack.c.l.b16 %v610
        %v675 = vunpack.c.l.b16 %v611
        %v676 = vunpack.c.l.b16 %v612
        %v677 = vunpack.c.l.b16 %v613
        %v678 = vunpack.c.l.b16 %v614
        %v679 = vunpack.c.l.b16 %v615
        %v680 = vunpack.c.l.b16 %v616
        %v681 = vunpack.c.l.b16 %v617
        %v682 = vunpack.c.l.b16 %v618
        %v683 = vunpack.c.l.b16 %v619
        %v684 = vpack.c.b16 %v653, %v652
        %v685 = vpack.c.b16 %v655, %v654
        %v686 = vpack.c.b16 %v657, %v656
        %v687 = vpack.c.b16 %v659, %v658
        %v688 = vpack.c.b16 %v661, %v660
        %v689 = vpack.c.b16 %v663, %v662
        %v690 = vpack.c.b16 %v665, %v664
        %v691 = vpack.c.b16 %v667, %v666
        %v692 = vpack.c.b16 %v669, %v668
        %v693 = vpack.c.b16 %v671, %v670
        %v694 = vpack.c.b16 %v673, %v672
        %v695 = vpack.c.b16 %v675, %v674
        %v696 = vpack.c.b16 %v677, %v676
        %v697 = vpack.c.b16 %v679, %v678
        %v698 = vpack.c.b16 %v681, %v680
        %v699 = vpack.c.b16 %v683, %v682
        %716 = vmatprep.subr.bf16.mxu0 0
        %717 = vmatpush1.bf16.msra.mxu0 %v691
        %718 = vmatprep.subr.bf16.mxu0 0
        %719 = vmatpush1.bf16.msra.mxu0 %v690
        %720 = vmatprep.subr.bf16.mxu0 0
        %721 = vmatpush1.bf16.msra.mxu0 %v689
        %722 = vmatprep.subr.bf16.mxu0 0
        %723 = vmatpush1.bf16.msra.mxu0 %v688
        %724 = vmatprep.subr.bf16.mxu0 0
        %725 = vmatpush1.bf16.msra.mxu0 %v687
        %726 = vmatprep.subr.bf16.mxu0 0
        %727 = vmatpush1.bf16.msra.mxu0 %v686
        %728 = vmatprep.subr.bf16.mxu0 0
        %729 = vmatpush1.bf16.msra.mxu0 %v685
        %730 = vmatprep.subr.bf16.mxu0 0
        %731 = vmatpush1.bf16.msra.mxu0 %v684
        %732 = vmatprep.subr.bf16.mxu0 0
        %733 = vmatpush2.bf16.msra.mxu0 %v699
        %734 = vmatprep.subr.bf16.mxu0 0
        %735 = vmatpush2.bf16.msra.mxu0 %v698
        %736 = vmatprep.subr.bf16.mxu0 0
        %737 = vmatpush2.bf16.msra.mxu0 %v697
        %738 = vmatprep.subr.bf16.mxu0 0
        %739 = vmatpush2.bf16.msra.mxu0 %v696
        %740 = vmatprep.subr.bf16.mxu0 0
        %741 = vmatpush2.bf16.msra.mxu0 %v695
        %742 = vmatprep.subr.bf16.mxu0 0
        %743 = vmatpush2.bf16.msra.mxu0 %v694
        %744 = vmatprep.subr.bf16.mxu0 0
        %745 = vmatpush2.bf16.msra.mxu0 %v693
        %746 = vmatprep.subr.bf16.mxu0 0
        %747 = vmatpush2.bf16.msra.mxu0 %v692
        %748 = vmatprep.mubr.bf16.mxu0 %v587
        %749 = vmatmul.mubr.bf16.gmra.mxu0 %v586
        %v750 = vpop.f32.mrf.mxu0
        %v751 = vadd.f32 0.0, %v750
        %v752 = vpop.f32.mrf.mxu0
        %v753 = vpop.f32.mrf.mxu0
        %v754 = vadd.f32 0.0, %v753
        %v755 = vpop.f32.mrf.mxu0
        %756 = vdwg.mxu0
        %v757 = vadd.f32 %v584, %v751
        %v758 = vadd.f32 %v585, %v754
        %759 = vst [vmem:[#allocation2] sm:$0xff] %v757
        %760 = vst [vmem:[#allocation2 + $0x8] sm:$0xff] %v758
        %p761 = scmp.eq.s32.totalorder %s24, 1
        // Predicated region
        $region49: #{_ffn_2d.1} parent=31 // pred_check
          %p762 = pneg %p761
        $region50: #{_ffn_2d.1} parent=31 // pred_check_branch
          %764 = sbr.rel (%p762) target = $region52
        $region51: #{_ffn_2d.1} parent=31 // pred_region
          %v765 = vld [vmem:[#allocation2] sm:$0xff]
          %v766 = vld [vmem:[#allocation2 + $0x8] sm:$0xff]
          %v767 = vpack.c.bf16 %v766, %v765
          %v769 = vunpack.c.l.b16 %v767
          %v770 = vunpack.c.h.b16 %v767
          %v771 = vpack.c.b16 %v769, %v769
          %v772 = vpack.c.b16 %v770, %v770
          %775 = vst [vmem:[#allocation9] sm:$0xf] %v771
          %776 = vst [vmem:[#allocation9 + $0x4] sm:$0xf] %v772
        $region52: #{_ffn_2d.1} parent=31 // pred_fallthru
          _
        // Predicated region
        $region53: #{_ffn_2d.1} parent=31 // pred_check
          %p777 = pneg %p127
        $region54: #{_ffn_2d.1} parent=31 // pred_check_branch
          %779 = sbr.rel (%p777) target = $region56
        $region55: #{_ffn_2d.1} parent=31 // pred_region
          %s780 = smul.u32 2, %s23
          %s782 = ssub.s32 128, 128
          %783 = vsyncadd [#allocation5], %s782
          %s784 = smul.addr %s780, 64
          %s785 = scalar_lea.hbm %s3, %s784
          %s786 = sshll.u32 [#allocation9], 4
          %s787 = int_to_ptr.vmem [resolvable:$true] %s786
          %792 = dma.vmem_to_hbm [thread:$0]  %s787, 128, %s785, [#allocation5], 64, 64, 4
        $region56: #{_ffn_2d.1} parent=31 // pred_fallthru
          _
        // Predicated region
        $region57: #{_ffn_2d.1} parent=31 // pred_check
          %p793 = pneg %p127
        $region58: #{_ffn_2d.1} parent=31 // pred_check_branch
          %795 = sbr.rel (%p793) target = $region60
        $region59: #{_ffn_2d.1} parent=31 // pred_region
          %796 = dma.done [#allocation5], 128
        $region60: #{_ffn_2d.1} parent=31 // pred_fallthru
          _
      $region32: #{_ffn_2d.1} parent=5 // pred_fallthru
        _
      %p797 = scmp.le.s32.totalorder 2, %s14
      // Predicated region
      $region61: #{_ffn_2d.1} parent=5 // pred_check
        %p798 = pneg %p797
      $region62: #{_ffn_2d.1} parent=5 // pred_check_branch
        %800 = sbr.rel (%p798) target = $region64
      $region63: #{_ffn_2d.1} parent=5 // pred_region
        %s801 = ssub.s32 %s14, 2
      $region64: #{_ffn_2d.1} parent=5 // pred_fallthru
        _
    $region6: #{_ffn_2d.1} parent=1 // loop_footer
      %s18 = sadd.s32 1, %s14
    $region7: #{_ffn_2d.1} parent=1 // loop_footer_branch
      %13 = sbr.rel target = $region3
    $region8: #{_ffn_2d.1} parent=1 // loop_exit
      _
    %802 = vsyncpa [#allocation4], 1
    %s803 = scalar_lea.sflag [#allocation4], 1
    %804 = vsyncpa %s803, 1
    %805 = vsyncpa [#allocation7], 1
    %s806 = scalar_lea.sflag [#allocation7], 1
    %807 = vsyncpa %s806, 1
    %808 = vsyncpa [#allocation5], 1
    %s809 = scalar_lea.sflag [#allocation5], 1
    %810 = vsyncpa %s809, 1

</llo_original>
